<compile_context>
chip_gen: v7x
topology: tpu7x:2x2x1
jax: 0.10.0
libtpu: 0.0.40
codegen_flags: <defaults>
</compile_context>

<pallas_src>
import jax
import jax.numpy as jnp
from jax.experimental import pallas as pl
from jax.experimental.pallas import tpu as pltpu

INPUT_SIZE = 11   # 11 feature columns in winequality-red.csv
OUTPUT_SIZE = 1   # ['quality']

LANE = 128        # TPU lane width


def _round_up(x, m):
    return ((x + m - 1) // m) * m


def _linear_kernel(x_ref, w_ref, b_ref, o_ref):
    # x_ref: (F, TB) VMEM   w_ref: (F, 1) VMEM   b_ref: (1,) SMEM   o_ref: (1, TB)
    prod = x_ref[...] * w_ref[...]                                   # VPU multiply
    o_ref[...] = jnp.sum(prod, axis=0, keepdims=True) + b_ref[0]     # XLU sublane reduce + bias


def wine_quality_forward(x, weight, bias, *, block_b=8192):
    """Forward pass of WineQuality (== nn.Linear(11, 1)).

    x:      (B, INPUT_SIZE) float32
    weight: (OUTPUT_SIZE, INPUT_SIZE) float32   (PyTorch nn.Linear layout)
    bias:   (OUTPUT_SIZE,) float32
    returns (B, OUTPUT_SIZE) float32
    """
    B, F = x.shape
    assert F == INPUT_SIZE

    # Batch tile: multiple of 128 lanes, large enough to hide per-step grid
    # overhead, small enough to double-buffer on every TPU generation.
    block_b = min(block_b, _round_up(B, LANE))
    block_b = _round_up(block_b, LANE)
    b_pad = _round_up(B, block_b)

    # Lane-dense layout: features -> sublanes, batch -> lanes.
    x_t = jnp.pad(x.T, ((0, 0), (0, b_pad - B)))                    # (F, b_pad)
    w_col = weight.reshape(OUTPUT_SIZE, INPUT_SIZE).T               # (F, 1), VMEM-resident
    b_vec = bias.reshape(OUTPUT_SIZE).astype(jnp.float32)           # (1,) SMEM scalar

    grid = (b_pad // block_b,)

    out_t = pl.pallas_call(
        _linear_kernel,
        out_shape=jax.ShapeDtypeStruct((OUTPUT_SIZE, b_pad), jnp.float32),
        grid=grid,
        in_specs=[
            pl.BlockSpec((INPUT_SIZE, block_b), lambda i: (0, i)),          # x tile
            pl.BlockSpec((INPUT_SIZE, OUTPUT_SIZE), lambda i: (0, 0)),      # weight (resident)
            pl.BlockSpec(memory_space=pltpu.MemorySpace.SMEM),              # bias scalar
        ],
        out_specs=pl.BlockSpec((OUTPUT_SIZE, block_b), lambda i: (0, i)),
        compiler_params=pltpu.CompilerParams(
            dimension_semantics=("parallel",),
        ),
    )(x_t, w_col, b_vec)

    # Back to the nn.Linear output convention: (B, OUTPUT_SIZE).
    return out_t[:, :B].T


def l1_loss(pred, target):
    # F.l1_loss (mean reduction) -- tiny glue reduction, kept in plain JAX.
    # TODO(synk): could be fused into the kernel as an SMEM accumulator to skip
    # one HBM round-trip of the predictions per validation step.
    return jnp.mean(jnp.abs(pred - target))


def _reference_forward(x, weight, bias):
    # Pure-f32 elementwise reference (identical math to nn.Linear semantics).
    return jnp.sum(x * weight[0][None, :], axis=-1, keepdims=True) + bias


if __name__ == "__main__":
    key = jax.random.PRNGKey(0)
    kx, kt, kw, kb = jax.random.split(key, 4)

    # batch_size=50, matching the DataLoader in the original script.
    batch = 50
    x = jax.random.normal(kx, (batch, INPUT_SIZE), dtype=jnp.float32)
    targets = jax.random.normal(kt, (batch, OUTPUT_SIZE), dtype=jnp.float32)

    # Deterministic init mimicking nn.Linear's U(-1/sqrt(fan_in), 1/sqrt(fan_in)).
    bound = 1.0 / (INPUT_SIZE ** 0.5)
    weight = jax.random.uniform(
        kw, (OUTPUT_SIZE, INPUT_SIZE), dtype=jnp.float32, minval=-bound, maxval=bound)
    bias = jax.random.uniform(
        kb, (OUTPUT_SIZE,), dtype=jnp.float32, minval=-bound, maxval=bound)

    # --- single-tile path (small batch) ---
    out = jax.block_until_ready(wine_quality_forward(x, weight, bias))
    ref = _reference_forward(x, weight, bias)
    assert out.shape == (batch, OUTPUT_SIZE)
    assert jnp.allclose(out, ref, atol=1e-5, rtol=1e-5)

    # --- multi-tile path (exercise the batch grid + tail padding) ---
    big_batch = 300
    xb = jax.random.normal(kx, (big_batch, INPUT_SIZE), dtype=jnp.float32)
    out_big = jax.block_until_ready(
        wine_quality_forward(xb, weight, bias, block_b=128))
    ref_big = _reference_forward(xb, weight, bias)
    assert out_big.shape == (big_batch, OUTPUT_SIZE)
    assert jnp.allclose(out_big, ref_big, atol=1e-5, rtol=1e-5)

    # validation_step-style loss (host/XLA glue, not part of the kernel hot path).
    loss = jax.block_until_ready(l1_loss(out, targets))
    assert loss.shape == ()

    print("KERNEL_OK")
</pallas_src>

<mosaic_0001>
module attributes {stable_mosaic.version = 11 : i64} {
  func.func @_linear_kernel(%arg0: i32, %arg1: memref<11x128xf32, #tpu.memory_space<vmem>>, %arg2: memref<11x1xf32, #tpu.memory_space<vmem>>, %arg3: memref<1xf32, #tpu.memory_space<smem>>, %arg4: memref<1x128xf32, #tpu.memory_space<vmem>>) attributes {dimension_semantics = [#tpu.dimension_semantics<parallel>], iteration_bounds = array<i64: 1>, scalar_prefetch = 0 : i64, scratch_operands = 0 : i64, tpu.core_type = #tpu.core_type<tc>, window_params = [{transform_indices = @transform_0, window_bounds = array<i64: 11, 128>}, {pipeline_mode = #tpu.pipeline_mode<synchronous>, transform_indices = @transform_1, window_bounds = array<i64: 11, 1>}, {transform_indices = @transform_2, window_bounds = array<i64: 1>}, {transform_indices = @transform_3, window_bounds = array<i64: 1, 128>}]} {
    %c0 = arith.constant 0 : index
    %c0_0 = arith.constant 0 : index
    %0 = vector.load %arg1[%c0, %c0_0] : memref<11x128xf32, #tpu.memory_space<vmem>>, vector<11x128xf32>
    %c0_1 = arith.constant 0 : index
    %c0_2 = arith.constant 0 : index
    %1 = vector.load %arg2[%c0_1, %c0_2] : memref<11x1xf32, #tpu.memory_space<vmem>>, vector<11x1xf32>
    %2 = vector.broadcast %1 : vector<11x1xf32> to vector<11x128xf32>
    %3 = arith.mulf %0, %2 : vector<11x128xf32>
    %cst = arith.constant dense<0.000000e+00> : vector<128xf32>
    %4 = vector.multi_reduction <add>, %3, %cst [0] : vector<11x128xf32> to vector<128xf32>
    %5 = vector.shape_cast %4 : vector<128xf32> to vector<1x128xf32>
    %c0_3 = arith.constant 0 : index
    %6 = memref.load %arg3[%c0_3] : memref<1xf32, #tpu.memory_space<smem>>
    %7 = vector.broadcast %6 : f32 to vector<1x128xf32>
    %8 = arith.addf %5, %7 : vector<1x128xf32>
    %c0_4 = arith.constant 0 : index
    %c0_5 = arith.constant 0 : index
    %9 = vector.load %arg4[%c0_4, %c0_5] : memref<1x128xf32, #tpu.memory_space<vmem>>, vector<1x128xf32>
    tpu.vector_store %arg4[%c0_4, %c0_5], %8 {strides = array<i32>} : memref<1x128xf32, #tpu.memory_space<vmem>>, vector<1x128xf32>,
    return
  }
  func.func @transform_0(%arg0: i32) -> (i32, i32) {
    %c0_i32 = arith.constant 0 : i32
    %c0_i32_0 = arith.constant 0 : i32
    return %c0_i32, %arg0 : i32, i32
  }
  func.func @transform_1(%arg0: i32) -> (i32, i32) {
    %c0_i32 = arith.constant 0 : i32
    %c0_i32_0 = arith.constant 0 : i32
    %c0_i32_1 = arith.constant 0 : i32
    return %c0_i32, %c0_i32_0 : i32, i32
  }
  func.func @transform_2(%arg0: i32) -> i32 {
    %c0_i32 = arith.constant 0 : i32
    %c0_i32_0 = arith.constant 0 : i32
    return %c0_i32 : i32
  }
  func.func @transform_3(%arg0: i32) -> (i32, i32) {
    %c0_i32 = arith.constant 0 : i32
    %c0_i32_0 = arith.constant 0 : i32
    return %c0_i32, %arg0 : i32, i32
  }
}

</mosaic_0001>

<llo_original>
// kernel: tpu_custom_call.1
$region0: #{tpu_custom_call.1}
  #allocation0 [shape = 'u32[]', space=smem, size = 0x4, offset = 0x4, fixed_abs, tag = 'smem constant byte address 0x4 - core index']
  #allocation1 [shape = 'u32[144,128]{1,0:T(1,128)}', space=vmem, size = 0x12000, scoped, tag = 'internal scratch']
  #allocation2 [shape = 'f32[1]{0:T(128)S(6)}', space=smem, size = 0x200, scoped, tag = 'scoped memory for tpu_custom_call.1']
  %s0 = inlined_call_operand.vmem [shape: f32[11,128], index: 0, kind: input, shape index: {}]
  %s1 = inlined_call_operand.vmem [shape: f32[11,1], index: 1, kind: input, shape index: {}]
  %s2 = inlined_call_operand.<no memory space> [shape: f32[1], index: 2, kind: input, shape index: {}]
  %s3 = inlined_call_operand.hbm [shape: f32[1,128], index: 3, kind: output, shape index: {}]
  %s4 = sld [smem:[#allocation0]]
  $region22: #{tpu_custom_call.1} parent=0
    _
  %s6 = ssub.s32 1, %s4
  %s7 = scalar_select 0, %s6, %s4
  %8 = sst [smem:[#allocation2]] %s2
  $region1: #{tpu_custom_call.1} parent=0
    #allocation3 [shape = 'u8[512]{0}', space=vmem, size = 0x400, scoped, tag = 'output window, operand 0, single buffered']
    #allocation4 [shape = 's32[1]{0}', space=sflag, size = 0x4, scoped, tag = 'scoped memory for tpu_custom_call.1']
    %9 = vsyncpa [#allocation4], 0
    // Predicated region
    $region2: #{tpu_custom_call.1} parent=1 // pred_check
      _
    $region3: #{tpu_custom_call.1} parent=1 // pred_check_branch
      %11 = sbr.rel (0) target = $region5
    $region4: #{tpu_custom_call.1} parent=1 // pred_region
      _
    $region5: #{tpu_custom_call.1} parent=1 // pred_fallthru
      _
    // Predicated region
    $region6: #{tpu_custom_call.1} parent=1 // pred_check
      _
    $region7: #{tpu_custom_call.1} parent=1 // pred_check_branch
      %13 = sbr.rel (0) target = $region9
    $region8: #{tpu_custom_call.1} parent=1 // pred_region
      _
    $region9: #{tpu_custom_call.1} parent=1 // pred_fallthru
      _
    // Predicated region
    $region10: #{tpu_custom_call.1} parent=1 // pred_check
      _
    $region11: #{tpu_custom_call.1} parent=1 // pred_check_branch
      %15 = sbr.rel (0) target = $region13
    $region12: #{tpu_custom_call.1} parent=1 // pred_region
      _
    $region13: #{tpu_custom_call.1} parent=1 // pred_fallthru
      _
    %v16 = vld [vmem:[%s0] sm:$0xff]
    %v17 = vld [vmem:[%s0 + $0x8] sm:$0x7]
    %v18 = vld [vmem:[%s1] sm:$0xff]
    %v19 = vld [vmem:[%s1 + $0x8] sm:$0x7]
    %21 = vset.pattern.permute.xlu0 0
    %22 = vperm.xlu0 %21, %v18
    %v23 = vpop.permute.xlu0 %22
    %26 = vset.pattern.permute.xlu0 0
    %27 = vperm.xlu0 %26, %v19
    %v28 = vpop.permute.xlu0 %27
    %v30 = vmul.f32 %v16, %v23
    %v31 = vmul.f32 %v17, %v28
    %vm32 = vcmask 1042432
    %v33 = vsel %vm32, %v31, 0.0
    %v34 = vadd.f32 %v30, %v33
    %v35 = vrot.slane %v34, 4
    %v36 = vadd.f32 %v34, %v35
    %v37 = vrot.slane %v36, 2
    %v38 = vadd.f32 %v36, %v37
    %v39 = vrot.slane %v38, 1
    %v40 = vadd.f32 %v38, %v39
    %s41 = sld [smem:[#allocation2]]
    %v42 = vstv %s41
    %v43 = vadd.f32 %v40, %v42
    %44 = vst [vmem:[#allocation3] sm:$0x1] %v43
    // Predicated region
    $region14: #{tpu_custom_call.1} parent=1 // pred_check
      _
    $region15: #{tpu_custom_call.1} parent=1 // pred_check_branch
      %46 = sbr.rel (0) target = $region17
    $region16: #{tpu_custom_call.1} parent=1 // pred_region
      %s48 = ssub.s32 16, 16
      %49 = vsyncadd [#allocation4], %s48
      %s51 = sshll.u32 [#allocation3], 4
      %s52 = int_to_ptr.vmem [resolvable:$true] %s51
      %54 = dma.vmem_to_hbm [thread:$0]  %s52, 16, %s3, [#allocation4]
    $region17: #{tpu_custom_call.1} parent=1 // pred_fallthru
      _
    // Predicated region
    $region18: #{tpu_custom_call.1} parent=1 // pred_check
      _
    $region19: #{tpu_custom_call.1} parent=1 // pred_check_branch
      %56 = sbr.rel (0) target = $region21
    $region20: #{tpu_custom_call.1} parent=1 // pred_region
      %57 = dma.done [#allocation4], 16
    $region21: #{tpu_custom_call.1} parent=1 // pred_fallthru
      _
    %58 = vsyncpa [#allocation4], 1

</llo_original>
